<compile_context>
chip_gen: v5e
topology: v5e:2x2
jax: 0.10.0
libtpu: 0.0.40
codegen_flags: <defaults>
</compile_context>

<pallas_src>
import functools

import jax
import jax.numpy as jnp
from jax.experimental import pallas as pl
from jax.experimental.pallas import tpu as pltpu


def _round_up(x, m):
    return ((x + m - 1) // m) * m


def _vmem_capacity_bytes():
    """Physical VMEM per TensorCore; conservative (v7x) fallback if unknown."""
    try:
        return int(pltpu.get_tpu_info().vmem_capacity_bytes)
    except Exception:
        return 64 << 20


def _vmem_needed(tile_b, tile_c, n_supports, d, in_itemsize):
    x1_buf = 2 * tile_b * d * in_itemsize                    # query tile, double-buffered
    slab_buf = 2 * d * n_supports * tile_c * in_itemsize     # support slab, double-buffered
    out_buf = 2 * tile_b * tile_c * 4                        # f32 out tile, double-buffered
    scratch = 2 * tile_b * tile_c * 4                        # per-step dot result + running max
    return x1_buf + slab_buf + out_buf + scratch


def _pick_tile_c(n_classes, tile_b, n_supports, d, in_itemsize, budget):
    """Pick tile_c from 128-multiples, minimizing class-padding waste under the VMEM budget."""
    best = None
    for tc in (512, 384, 256, 128):
        if _vmem_needed(tile_b, tc, n_supports, d, in_itemsize) > budget:
            continue
        waste = _round_up(n_classes, tc) - n_classes
        key = (waste, -tc)                                   # least waste, then biggest tile
        if best is None or key < best[0]:
            best = (key, tc)
    return 128 if best is None else best[1]


# ---------------------------------------------------------------------------
# Kernel
# ---------------------------------------------------------------------------
def _cos_metric_kernel(x1_ref, w_ref, out_ref, *, n_supports, tile_c):
    # x1_ref : (TB, D)           query tile (native dtype)
    # w_ref  : (D, K * tile_c)   fused support slab for this class tile
    #                            (lane index = k * tile_c + c_local)
    # out_ref: (TB, tile_c)      float32
    x = x1_ref[...]
    # K accumulating matmuls (N = tile_c >= 128 each) with an elementwise max
    # fold: no (TB, K*tile_c) intermediate, and the VPU max overlaps the next
    # MXU push instead of waiting for one giant result pop.
    best = jnp.dot(x, w_ref[:, 0:tile_c], preferred_element_type=jnp.float32)
    for k in range(1, n_supports):                            # small static unroll
        s = jnp.dot(x, w_ref[:, k * tile_c:(k + 1) * tile_c],
                    preferred_element_type=jnp.float32)
        best = jnp.maximum(best, s)
    out_ref[...] = best


# ---------------------------------------------------------------------------
# Support-slab packing (hoistable: pack once, reuse across calls)
# ---------------------------------------------------------------------------
def pack_support_slab(x2, tile_c):
    """(C, K, D) -> (n_c, D, K*tile_c): k-major / class-minor along the lane axis.

    Padded (fake) classes are zero; they can never win a max over real scores
    because they are sliced off in the wrapper before returning.
    """
    C, K, D = x2.shape
    Cp = _round_up(C, tile_c)
    if Cp != C:
        x2 = jnp.pad(x2, ((0, Cp - C), (0, 0), (0, 0)))
    n_c = Cp // tile_c
    return (x2.reshape(n_c, tile_c, K, D)
              .transpose(0, 3, 2, 1)
              .reshape(n_c, D, K * tile_c))


# ---------------------------------------------------------------------------
# Entry points
# ---------------------------------------------------------------------------
def insto_class_cos_metric_packed(x1, w, *, n_classes, n_supports, tile_b=None):
    """x1: (B, D); w: pre-packed (n_c, D, K*tile_c) from pack_support_slab()."""
    B, D = x1.shape
    n_c, D2, kt = w.shape
    assert D == D2, "feature dims must match"
    K = n_supports
    assert kt % K == 0
    tile_c = kt // K
    Cp = n_c * tile_c
    assert Cp >= n_classes

    itemsize = jnp.dtype(x1.dtype).itemsize
    vmem_cap = _vmem_capacity_bytes()
    budget = int(0.70 * vmem_cap)

    # ---- query tiling ------------------------------------------------------
    if tile_b is None:
        # Fill the 256x256 MXU M dim on v6e/v7x; padded rows are near-free.
        tile_b = min(512, _round_up(B, 256))
    else:
        tile_b = _round_up(tile_b, 8)
    # Shrink tile_b if the working set overflows the per-generation budget.
    while _vmem_needed(tile_b, tile_c, K, D, itemsize) > budget and tile_b > 128:
        tile_b = max(128, tile_b // 2)

    Bp = _round_up(B, tile_b)
    n_b = Bp // tile_b
    if Bp != B:
        x1 = jnp.pad(x1, ((0, Bp - B), (0, 0)))

    # ---- HBM-traffic-aware grid order --------------------------------------
    # The inner grid axis is fully re-streamed for every outer step; put the
    # cheaper stream inside so the dominant array moves over HBM only once.
    slab_bytes = Cp * K * D * itemsize
    x1_bytes = Bp * D * itemsize
    b_outer = (n_b * slab_bytes + x1_bytes) <= (n_c * x1_bytes + slab_bytes)
    if b_outer:
        grid = (n_b, n_c)
        x1_map = lambda i, j: (i, 0)
        w_map = lambda i, j: (j, 0, 0)
        out_map = lambda i, j: (i, j)
        streamed = n_b * slab_bytes + x1_bytes
    else:
        grid = (n_c, n_b)
        x1_map = lambda j, i: (i, 0)
        w_map = lambda j, i: (j, 0, 0)
        out_map = lambda j, i: (i, j)
        streamed = n_c * x1_bytes + slab_bytes

    # ---- VMEM limit: always explicit, never above physical ------------------
    needed = _vmem_needed(tile_b, tile_c, K, D, itemsize)
    vmem_limit = int(min(max(needed + (4 << 20), 16 << 20), int(0.85 * vmem_cap)))

    cost = pl.CostEstimate(
        flops=2 * Bp * D * K * Cp,
        transcendentals=0,
        bytes_accessed=int(streamed + Bp * Cp * 4),
    )

    kernel = functools.partial(_cos_metric_kernel, n_supports=K, tile_c=tile_c)

    out = pl.pallas_call(
        kernel,
        out_shape=jax.ShapeDtypeStruct((Bp, Cp), jnp.float32),
        grid_spec=pltpu.PrefetchScalarGridSpec(
            num_scalar_prefetch=0,
            grid=grid,
            in_specs=[
                pl.BlockSpec((tile_b, D), x1_map),                 # query tile
                pl.BlockSpec((None, D, K * tile_c), w_map),        # class-tile slab
            ],
            out_specs=pl.BlockSpec((tile_b, tile_c), out_map),
        ),
        compiler_params=pltpu.CompilerParams(
            dimension_semantics=("parallel", "parallel"),
            vmem_limit_bytes=vmem_limit,
        ),
        cost_estimate=cost,
    )(x1, w)

    return out[:B, :n_classes]


def insto_class_cos_metric(x1, x2, *, tile_b=None, tile_c=None, compute_dtype=None):
    """x1: (B, D), x2: (C, K, D)  ->  (B, C) float32, out[b,c] = max_k <x1[b], x2[c,k]>.

    Pass compute_dtype=jnp.bfloat16 on v6e/v7x for full-rate MXU + halved DMA
    (accumulation stays f32). For repeated calls with fixed classes, call
    pack_support_slab() once and use insto_class_cos_metric_packed() directly.
    """
    B, D = x1.shape
    C, K, D2 = x2.shape
    assert D == D2, "feature dims must match"

    if compute_dtype is not None:
        x1 = x1.astype(compute_dtype)
        x2 = x2.astype(compute_dtype)

    itemsize = jnp.dtype(x1.dtype).itemsize
    vmem_cap = _vmem_capacity_bytes()
    budget = int(0.70 * vmem_cap)

    if tile_b is None:
        tb_for_sizing = min(512, _round_up(B, 256))
    else:
        tb_for_sizing = _round_up(tile_b, 8)

    if tile_c is None:
        tile_c = _pick_tile_c(C, tb_for_sizing, K, D, itemsize, budget)
    else:
        tile_c = _round_up(tile_c, 128)

    w = pack_support_slab(x2, tile_c)
    return insto_class_cos_metric_packed(
        x1, w, n_classes=C, n_supports=K, tile_b=tile_b)


# NOTE: despite the PyTorch class name "CosMetric", the reference forward uses
# raw (un-normalized) dot products; this kernel matches that exactly.

if __name__ == "__main__":
    key = jax.random.PRNGKey(0)
    k1, k2, k3, k4 = jax.random.split(key, 4)

    # Test 1: tiny shapes matching the module's forward (B queries, C classes,
    # K supports per class, D features).
    B, C, K, D = 8, 4, 3, 32
    x1 = jax.random.normal(k1, (B, D), dtype=jnp.float32)
    x2 = jax.random.normal(k2, (C, K, D), dtype=jnp.float32)
    out = jax.block_until_ready(insto_class_cos_metric(x1, x2))
    ref = jnp.max(jnp.einsum("bd,ckd->bck", x1, x2), axis=-1)
    assert out.shape == (B, C)
    assert jnp.allclose(out, ref, atol=1e-4, rtol=1e-4)

    # Test 2: ragged B, C padded to 128, multi-step grid; exercises the
    # traffic-aware grid order (slab resident, x1 streamed) and padding paths.
    B2, C2, K2, Dh = 300, 100, 5, 128
    y1 = jax.random.normal(k3, (B2, Dh), dtype=jnp.float32)
    y2 = jax.random.normal(k4, (C2, K2, Dh), dtype=jnp.float32)
    out2 = jax.block_until_ready(insto_class_cos_metric(y1, y2, tile_b=128))
    ref2 = jnp.max(jnp.einsum("bd,ckd->bck", y1, y2), axis=-1)
    assert out2.shape == (B2, C2)
    assert jnp.allclose(out2, ref2, atol=1e-3, rtol=1e-3)

    # Test 3: bf16 compute path (recommended on v6e/v7x), f32 accumulation.
    out3 = jax.block_until_ready(
        insto_class_cos_metric(y1, y2, compute_dtype=jnp.bfloat16))
    y1b = y1.astype(jnp.bfloat16).astype(jnp.float32)
    y2b = y2.astype(jnp.bfloat16).astype(jnp.float32)
    ref3 = jnp.max(jnp.einsum("bd,ckd->bck", y1b, y2b), axis=-1)
    assert out3.shape == (B2, C2)
    assert jnp.allclose(out3, ref3, atol=1e-2, rtol=1e-2)

    # Test 4: pre-packed (hoisted relayout) entry point reused across calls.
    w_packed = pack_support_slab(y2, 128)
    out4 = jax.block_until_ready(
        insto_class_cos_metric_packed(y1, w_packed, n_classes=C2, n_supports=K2))
    assert jnp.allclose(out4, ref2, atol=1e-3, rtol=1e-3)

    print("KERNEL_OK")
</pallas_src>

<mosaic_0001>
module attributes {stable_mosaic.version = 11 : i64} {
  func.func @_cos_metric_kernel(%arg0: i32, %arg1: i32, %arg2: memref<256x32xf32, #tpu.memory_space<vmem>>, %arg3: memref<1x32x384xf32, #tpu.memory_space<vmem>>, %arg4: memref<256x128xf32, #tpu.memory_space<vmem>>) attributes {dimension_semantics = [#tpu.dimension_semantics<parallel>, #tpu.dimension_semantics<parallel>], iteration_bounds = array<i64: 1, 1>, scalar_prefetch = 0 : i64, scratch_operands = 0 : i64, tpu.core_type = #tpu.core_type<tc>, window_params = [{transform_indices = @transform_0, window_bounds = array<i64: 256, 32>}, {transform_indices = @transform_1, window_bounds = array<i64: 1, 32, 384>}, {transform_indices = @transform_2, window_bounds = array<i64: 256, 128>}]} {
    %c0 = arith.constant 0 : index
    %c0_0 = arith.constant 0 : index
    %0 = vector.load %arg2[%c0, %c0_0] : memref<256x32xf32, #tpu.memory_space<vmem>>, vector<256x32xf32>
    %c0_1 = arith.constant 0 : index
    %c0_2 = arith.constant 0 : index
    %c0_3 = arith.constant 0 : index
    %1 = vector.load %arg3[%c0_1, %c0_2, %c0_3] : memref<1x32x384xf32, #tpu.memory_space<vmem>>, vector<1x32x128xf32>
    %2 = vector.shape_cast %1 : vector<1x32x128xf32> to vector<32x128xf32>
    %cst = arith.constant dense<0.000000e+00> : vector<256x128xf32>
    %3 = tpu.matmul %0, %2, %cst {dimension_numbers = #tpu.dot_dimension_numbers<[1], [0], [0], [1], [0, 0, 1, 1], [], []>} : vector<256x32xf32>, vector<32x128xf32>, vector<256x128xf32> -> vector<256x128xf32>
    %c0_4 = arith.constant 0 : index
    %c0_5 = arith.constant 0 : index
    %c128 = arith.constant 128 : index
    %4 = vector.load %arg3[%c0_4, %c0_5, %c128] : memref<1x32x384xf32, #tpu.memory_space<vmem>>, vector<1x32x128xf32>
    %5 = vector.shape_cast %4 : vector<1x32x128xf32> to vector<32x128xf32>
    %cst_6 = arith.constant dense<0.000000e+00> : vector<256x128xf32>
    %6 = tpu.matmul %0, %5, %cst_6 {dimension_numbers = #tpu.dot_dimension_numbers<[1], [0], [0], [1], [0, 0, 1, 1], [], []>} : vector<256x32xf32>, vector<32x128xf32>, vector<256x128xf32> -> vector<256x128xf32>
    %7 = arith.maximumf %3, %6 : vector<256x128xf32>
    %c0_7 = arith.constant 0 : index
    %c0_8 = arith.constant 0 : index
    %c256 = arith.constant 256 : index
    %8 = vector.load %arg3[%c0_7, %c0_8, %c256] : memref<1x32x384xf32, #tpu.memory_space<vmem>>, vector<1x32x128xf32>
    %9 = vector.shape_cast %8 : vector<1x32x128xf32> to vector<32x128xf32>
    %cst_9 = arith.constant dense<0.000000e+00> : vector<256x128xf32>
    %10 = tpu.matmul %0, %9, %cst_9 {dimension_numbers = #tpu.dot_dimension_numbers<[1], [0], [0], [1], [0, 0, 1, 1], [], []>} : vector<256x32xf32>, vector<32x128xf32>, vector<256x128xf32> -> vector<256x128xf32>
    %11 = arith.maximumf %7, %10 : vector<256x128xf32>
    %c0_10 = arith.constant 0 : index
    %c0_11 = arith.constant 0 : index
    %12 = vector.load %arg4[%c0_10, %c0_11] : memref<256x128xf32, #tpu.memory_space<vmem>>, vector<256x128xf32>
    tpu.vector_store %arg4[%c0_10, %c0_11], %11 {strides = array<i32>} : memref<256x128xf32, #tpu.memory_space<vmem>>, vector<256x128xf32>,
    return
  }
  func.func @transform_0(%arg0: i32, %arg1: i32) -> (i32, i32) {
    %c0_i32 = arith.constant 0 : i32
    %c0_i32_0 = arith.constant 0 : i32
    return %arg0, %c0_i32 : i32, i32
  }
  func.func @transform_1(%arg0: i32, %arg1: i32) -> (i32, i32, i32) {
    %c0_i32 = arith.constant 0 : i32
    %c0_i32_0 = arith.constant 0 : i32
    %c0_i32_1 = arith.constant 0 : i32
    return %arg1, %c0_i32, %c0_i32_0 : i32, i32, i32
  }
  func.func @transform_2(%arg0: i32, %arg1: i32) -> (i32, i32) {
    %c0_i32 = arith.constant 0 : i32
    return %arg0, %arg1 : i32, i32
  }
}

</mosaic_0001>

<llo_original>
// kernel: tpu_custom_call.1
$region0: #{tpu_custom_call.1}
  #allocation0 [shape = 'u32[]', space=smem, size = 0x4, offset = 0x4, fixed_abs, tag = 'smem constant byte address 0x4 - core index']
  #allocation1 [shape = 'u32[72,128]{1,0:T(1,128)}', space=vmem, size = 0x9000, scoped, tag = 'internal scratch']
  %s0 = inlined_call_operand.vmem [shape: f32[256,32], index: 0, kind: input, shape index: {}]
  %s1 = inlined_call_operand.vmem [shape: f32[1,32,384], index: 1, kind: input, shape index: {}]
  %s2 = inlined_call_operand.hbm [shape: f32[256,128], index: 2, kind: output, shape index: {}]
  %s3 = sld [smem:[#allocation0]]
  $region18: #{tpu_custom_call.1} parent=0
    _
  %s5 = ssub.s32 1, %s3
  %s6 = scalar_select 0, %s5, %s3
  $region1: #{tpu_custom_call.1} parent=0
    #allocation2 [shape = 'u8[131072]{0}', space=vmem, size = 0x20000, scoped, tag = 'output window, operand 0, single buffered']
    #allocation3 [shape = 's32[1]{0}', space=sflag, size = 0x4, scoped, tag = 'scoped memory for tpu_custom_call.1']
    %7 = vsyncpa [#allocation3], 0
    // Predicated region
    $region2: #{tpu_custom_call.1} parent=1 // pred_check
      _
    $region3: #{tpu_custom_call.1} parent=1 // pred_check_branch
      %9 = sbr.rel (0) target = $region5
    $region4: #{tpu_custom_call.1} parent=1 // pred_region
      _
    $region5: #{tpu_custom_call.1} parent=1 // pred_fallthru
      _
    // Predicated region
    $region6: #{tpu_custom_call.1} parent=1 // pred_check
      _
    $region7: #{tpu_custom_call.1} parent=1 // pred_check_branch
      %11 = sbr.rel (0) target = $region9
    $region8: #{tpu_custom_call.1} parent=1 // pred_region
      _
    $region9: #{tpu_custom_call.1} parent=1 // pred_fallthru
      _
    %v12 = vld [vmem:[%s0] sm:$0xff]
    %v13 = vld [vmem:[%s0 + $0x8] sm:$0xff]
    %v14 = vld [vmem:[%s0 + $0x10] sm:$0xff]
    %v15 = vld [vmem:[%s0 + $0x18] sm:$0xff]
    %v16 = vld [vmem:[%s0 + $0x20] sm:$0xff]
    %v17 = vld [vmem:[%s0 + $0x28] sm:$0xff]
    %v18 = vld [vmem:[%s0 + $0x30] sm:$0xff]
    %v19 = vld [vmem:[%s0 + $0x38] sm:$0xff]
    %v20 = vld [vmem:[%s0 + $0x40] sm:$0xff]
    %v21 = vld [vmem:[%s0 + $0x48] sm:$0xff]
    %v22 = vld [vmem:[%s0 + $0x50] sm:$0xff]
    %v23 = vld [vmem:[%s0 + $0x58] sm:$0xff]
    %v24 = vld [vmem:[%s0 + $0x60] sm:$0xff]
    %v25 = vld [vmem:[%s0 + $0x68] sm:$0xff]
    %v26 = vld [vmem:[%s0 + $0x70] sm:$0xff]
    %v27 = vld [vmem:[%s0 + $0x78] sm:$0xff]
    %v28 = vld [vmem:[%s0 + $0x80] sm:$0xff]
    %v29 = vld [vmem:[%s0 + $0x88] sm:$0xff]
    %v30 = vld [vmem:[%s0 + $0x90] sm:$0xff]
    %v31 = vld [vmem:[%s0 + $0x98] sm:$0xff]
    %v32 = vld [vmem:[%s0 + $0xa0] sm:$0xff]
    %v33 = vld [vmem:[%s0 + $0xa8] sm:$0xff]
    %v34 = vld [vmem:[%s0 + $0xb0] sm:$0xff]
    %v35 = vld [vmem:[%s0 + $0xb8] sm:$0xff]
    %v36 = vld [vmem:[%s0 + $0xc0] sm:$0xff]
    %v37 = vld [vmem:[%s0 + $0xc8] sm:$0xff]
    %v38 = vld [vmem:[%s0 + $0xd0] sm:$0xff]
    %v39 = vld [vmem:[%s0 + $0xd8] sm:$0xff]
    %v40 = vld [vmem:[%s0 + $0xe0] sm:$0xff]
    %v41 = vld [vmem:[%s0 + $0xe8] sm:$0xff]
    %v42 = vld [vmem:[%s0 + $0xf0] sm:$0xff]
    %v43 = vld [vmem:[%s0 + $0xf8] sm:$0xff]
    %v44 = vld [vmem:[%s1] sm:$0xff]
    %v45 = vld [vmem:[%s1 + $0x18] sm:$0xff]
    %v46 = vld [vmem:[%s1 + $0x30] sm:$0xff]
    %v47 = vld [vmem:[%s1 + $0x48] sm:$0xff]
    %vm48 = vcmask 261120
    %v50 = vsel %vm48, %v12, 0
    %v53 = vsel %vm48, %v13, 0
    %v56 = vsel %vm48, %v14, 0
    %v59 = vsel %vm48, %v15, 0
    %v62 = vsel %vm48, %v16, 0
    %v65 = vsel %vm48, %v17, 0
    %v68 = vsel %vm48, %v18, 0
    %v71 = vsel %vm48, %v19, 0
    %v74 = vsel %vm48, %v20, 0
    %v77 = vsel %vm48, %v21, 0
    %v80 = vsel %vm48, %v22, 0
    %v83 = vsel %vm48, %v23, 0
    %v86 = vsel %vm48, %v24, 0
    %v89 = vsel %vm48, %v25, 0
    %v92 = vsel %vm48, %v26, 0
    %v95 = vsel %vm48, %v27, 0
    %v98 = vsel %vm48, %v28, 0
    %v101 = vsel %vm48, %v29, 0
    %v104 = vsel %vm48, %v30, 0
    %v107 = vsel %vm48, %v31, 0
    %v110 = vsel %vm48, %v32, 0
    %v113 = vsel %vm48, %v33, 0
    %v116 = vsel %vm48, %v34, 0
    %v119 = vsel %vm48, %v35, 0
    %v122 = vsel %vm48, %v36, 0
    %v125 = vsel %vm48, %v37, 0
    %v128 = vsel %vm48, %v38, 0
    %v131 = vsel %vm48, %v39, 0
    %v134 = vsel %vm48, %v40, 0
    %v137 = vsel %vm48, %v41, 0
    %v140 = vsel %vm48, %v42, 0
    %v143 = vsel %vm48, %v43, 0
    %145 = vmatpush.msra.mxu0 0.0
    %146 = vmatpush.msra.mxu0 0.0
    %147 = vmatpush.msra.mxu0 0.0
    %148 = vmatpush.msra.mxu0 0.0
    %149 = vmatpush.msra.mxu0 0.0
    %150 = vmatpush.msra.mxu0 0.0
    %151 = vmatpush.msra.mxu0 0.0
    %152 = vmatpush.msra.mxu0 0.0
    %153 = vmatpush.msra.mxu0 0.0
    %154 = vmatpush.msra.mxu0 0.0
    %155 = vmatpush.msra.mxu0 0.0
    %156 = vmatpush.msra.mxu0 0.0
    %157 = vmatpush.msra.mxu0 %v47
    %158 = vmatpush.msra.mxu0 %v46
    %159 = vmatpush.msra.mxu0 %v45
    %160 = vmatpush.msra.mxu0 %v44
    %161 = vmatmul.f32.gmra.mxu0 %v50
    %v162 = vpop.f32.mrf.mxu0
    %v163 = vadd.f32 0.0, %v162
    %164 = vmatmul.f32.gmra.mxu0 %v53
    %v165 = vpop.f32.mrf.mxu0
    %v166 = vadd.f32 0.0, %v165
    %167 = vmatmul.f32.gmra.mxu0 %v56
    %v168 = vpop.f32.mrf.mxu0
    %v169 = vadd.f32 0.0, %v168
    %170 = vmatmul.f32.gmra.mxu0 %v59
    %v171 = vpop.f32.mrf.mxu0
    %v172 = vadd.f32 0.0, %v171
    %173 = vmatmul.f32.gmra.mxu0 %v62
    %v174 = vpop.f32.mrf.mxu0
    %v175 = vadd.f32 0.0, %v174
    %176 = vmatmul.f32.gmra.mxu0 %v65
    %v177 = vpop.f32.mrf.mxu0
    %v178 = vadd.f32 0.0, %v177
    %179 = vmatmul.f32.gmra.mxu0 %v68
    %v180 = vpop.f32.mrf.mxu0
    %v181 = vadd.f32 0.0, %v180
    %182 = vmatmul.f32.gmra.mxu0 %v71
    %v183 = vpop.f32.mrf.mxu0
    %v184 = vadd.f32 0.0, %v183
    %185 = vmatmul.f32.gmra.mxu0 %v74
    %v186 = vpop.f32.mrf.mxu0
    %v187 = vadd.f32 0.0, %v186
    %188 = vmatmul.f32.gmra.mxu0 %v77
    %v189 = vpop.f32.mrf.mxu0
    %v190 = vadd.f32 0.0, %v189
    %191 = vmatmul.f32.gmra.mxu0 %v80
    %v192 = vpop.f32.mrf.mxu0
    %v193 = vadd.f32 0.0, %v192
    %194 = vmatmul.f32.gmra.mxu0 %v83
    %v195 = vpop.f32.mrf.mxu0
    %v196 = vadd.f32 0.0, %v195
    %197 = vmatmul.f32.gmra.mxu0 %v86
    %v198 = vpop.f32.mrf.mxu0
    %v199 = vadd.f32 0.0, %v198
    %200 = vmatmul.f32.gmra.mxu0 %v89
    %v201 = vpop.f32.mrf.mxu0
    %v202 = vadd.f32 0.0, %v201
    %203 = vmatmul.f32.gmra.mxu0 %v92
    %v204 = vpop.f32.mrf.mxu0
    %v205 = vadd.f32 0.0, %v204
    %206 = vmatmul.f32.gmra.mxu0 %v95
    %v207 = vpop.f32.mrf.mxu0
    %v208 = vadd.f32 0.0, %v207
    %209 = vmatmul.f32.gmra.mxu0 %v98
    %v210 = vpop.f32.mrf.mxu0
    %v211 = vadd.f32 0.0, %v210
    %212 = vmatmul.f32.gmra.mxu0 %v101
    %v213 = vpop.f32.mrf.mxu0
    %v214 = vadd.f32 0.0, %v213
    %215 = vmatmul.f32.gmra.mxu0 %v104
    %v216 = vpop.f32.mrf.mxu0
    %v217 = vadd.f32 0.0, %v216
    %218 = vmatmul.f32.gmra.mxu0 %v107
    %v219 = vpop.f32.mrf.mxu0
    %v220 = vadd.f32 0.0, %v219
    %221 = vmatmul.f32.gmra.mxu0 %v110
    %v222 = vpop.f32.mrf.mxu0
    %v223 = vadd.f32 0.0, %v222
    %224 = vmatmul.f32.gmra.mxu0 %v113
    %v225 = vpop.f32.mrf.mxu0
    %v226 = vadd.f32 0.0, %v225
    %227 = vmatmul.f32.gmra.mxu0 %v116
    %v228 = vpop.f32.mrf.mxu0
    %v229 = vadd.f32 0.0, %v228
    %230 = vmatmul.f32.gmra.mxu0 %v119
    %v231 = vpop.f32.mrf.mxu0
    %v232 = vadd.f32 0.0, %v231
    %233 = vmatmul.f32.gmra.mxu0 %v122
    %v234 = vpop.f32.mrf.mxu0
    %v235 = vadd.f32 0.0, %v234
    %236 = vmatmul.f32.gmra.mxu0 %v125
    %v237 = vpop.f32.mrf.mxu0
    %v238 = vadd.f32 0.0, %v237
    %239 = vmatmul.f32.gmra.mxu0 %v128
    %v240 = vpop.f32.mrf.mxu0
    %v241 = vadd.f32 0.0, %v240
    %242 = vmatmul.f32.gmra.mxu0 %v131
    %v243 = vpop.f32.mrf.mxu0
    %v244 = vadd.f32 0.0, %v243
    %245 = vmatmul.f32.gmra.mxu0 %v134
    %v246 = vpop.f32.mrf.mxu0
    %v247 = vadd.f32 0.0, %v246
    %248 = vmatmul.f32.gmra.mxu0 %v137
    %v249 = vpop.f32.mrf.mxu0
    %v250 = vadd.f32 0.0, %v249
    %251 = vmatmul.f32.gmra.mxu0 %v140
    %v252 = vpop.f32.mrf.mxu0
    %v253 = vadd.f32 0.0, %v252
    %254 = vmatmul.f32.gmra.mxu0 %v143
    %v255 = vpop.f32.mrf.mxu0
    %v256 = vadd.f32 0.0, %v255
    %257 = vdwg.mxu0
    %v258 = vld [vmem:[%s1 + $0x8] sm:$0xff]
    %v259 = vld [vmem:[%s1 + $0x20] sm:$0xff]
    %v260 = vld [vmem:[%s1 + $0x38] sm:$0xff]
    %v261 = vld [vmem:[%s1 + $0x50] sm:$0xff]
    %262 = vmatpush.msra.mxu0 0.0
    %263 = vmatpush.msra.mxu0 0.0
    %264 = vmatpush.msra.mxu0 0.0
    %265 = vmatpush.msra.mxu0 0.0
    %266 = vmatpush.msra.mxu0 0.0
    %267 = vmatpush.msra.mxu0 0.0
    %268 = vmatpush.msra.mxu0 0.0
    %269 = vmatpush.msra.mxu0 0.0
    %270 = vmatpush.msra.mxu0 0.0
    %271 = vmatpush.msra.mxu0 0.0
    %272 = vmatpush.msra.mxu0 0.0
    %273 = vmatpush.msra.mxu0 0.0
    %274 = vmatpush.msra.mxu0 %v261
    %275 = vmatpush.msra.mxu0 %v260
    %276 = vmatpush.msra.mxu0 %v259
    %277 = vmatpush.msra.mxu0 %v258
    %278 = vmatmul.f32.gmra.mxu0 %v50
    %v279 = vpop.f32.mrf.mxu0
    %v280 = vadd.f32 0.0, %v279
    %281 = vmatmul.f32.gmra.mxu0 %v53
    %v282 = vpop.f32.mrf.mxu0
    %v283 = vadd.f32 0.0, %v282
    %284 = vmatmul.f32.gmra.mxu0 %v56
    %v285 = vpop.f32.mrf.mxu0
    %v286 = vadd.f32 0.0, %v285
    %287 = vmatmul.f32.gmra.mxu0 %v59
    %v288 = vpop.f32.mrf.mxu0
    %v289 = vadd.f32 0.0, %v288
    %290 = vmatmul.f32.gmra.mxu0 %v62
    %v291 = vpop.f32.mrf.mxu0
    %v292 = vadd.f32 0.0, %v291
    %293 = vmatmul.f32.gmra.mxu0 %v65
    %v294 = vpop.f32.mrf.mxu0
    %v295 = vadd.f32 0.0, %v294
    %296 = vmatmul.f32.gmra.mxu0 %v68
    %v297 = vpop.f32.mrf.mxu0
    %v298 = vadd.f32 0.0, %v297
    %299 = vmatmul.f32.gmra.mxu0 %v71
    %v300 = vpop.f32.mrf.mxu0
    %v301 = vadd.f32 0.0, %v300
    %302 = vmatmul.f32.gmra.mxu0 %v74
    %v303 = vpop.f32.mrf.mxu0
    %v304 = vadd.f32 0.0, %v303
    %305 = vmatmul.f32.gmra.mxu0 %v77
    %v306 = vpop.f32.mrf.mxu0
    %v307 = vadd.f32 0.0, %v306
    %308 = vmatmul.f32.gmra.mxu0 %v80
    %v309 = vpop.f32.mrf.mxu0
    %v310 = vadd.f32 0.0, %v309
    %311 = vmatmul.f32.gmra.mxu0 %v83
    %v312 = vpop.f32.mrf.mxu0
    %v313 = vadd.f32 0.0, %v312
    %314 = vmatmul.f32.gmra.mxu0 %v86
    %v315 = vpop.f32.mrf.mxu0
    %v316 = vadd.f32 0.0, %v315
    %317 = vmatmul.f32.gmra.mxu0 %v89
    %v318 = vpop.f32.mrf.mxu0
    %v319 = vadd.f32 0.0, %v318
    %320 = vmatmul.f32.gmra.mxu0 %v92
    %v321 = vpop.f32.mrf.mxu0
    %v322 = vadd.f32 0.0, %v321
    %323 = vmatmul.f32.gmra.mxu0 %v95
    %v324 = vpop.f32.mrf.mxu0
    %v325 = vadd.f32 0.0, %v324
    %326 = vmatmul.f32.gmra.mxu0 %v98
    %v327 = vpop.f32.mrf.mxu0
    %v328 = vadd.f32 0.0, %v327
    %329 = vmatmul.f32.gmra.mxu0 %v101
    %v330 = vpop.f32.mrf.mxu0
    %v331 = vadd.f32 0.0, %v330
    %332 = vmatmul.f32.gmra.mxu0 %v104
    %v333 = vpop.f32.mrf.mxu0
    %v334 = vadd.f32 0.0, %v333
    %335 = vmatmul.f32.gmra.mxu0 %v107
    %v336 = vpop.f32.mrf.mxu0
    %v337 = vadd.f32 0.0, %v336
    %338 = vmatmul.f32.gmra.mxu0 %v110
    %v339 = vpop.f32.mrf.mxu0
    %v340 = vadd.f32 0.0, %v339
    %341 = vmatmul.f32.gmra.mxu0 %v113
    %v342 = vpop.f32.mrf.mxu0
    %v343 = vadd.f32 0.0, %v342
    %344 = vmatmul.f32.gmra.mxu0 %v116
    %v345 = vpop.f32.mrf.mxu0
    %v346 = vadd.f32 0.0, %v345
    %347 = vmatmul.f32.gmra.mxu0 %v119
    %v348 = vpop.f32.mrf.mxu0
    %v349 = vadd.f32 0.0, %v348
    %350 = vmatmul.f32.gmra.mxu0 %v122
    %v351 = vpop.f32.mrf.mxu0
    %v352 = vadd.f32 0.0, %v351
    %353 = vmatmul.f32.gmra.mxu0 %v125
    %v354 = vpop.f32.mrf.mxu0
    %v355 = vadd.f32 0.0, %v354
    %356 = vmatmul.f32.gmra.mxu0 %v128
    %v357 = vpop.f32.mrf.mxu0
    %v358 = vadd.f32 0.0, %v357
    %359 = vmatmul.f32.gmra.mxu0 %v131
    %v360 = vpop.f32.mrf.mxu0
    %v361 = vadd.f32 0.0, %v360
    %362 = vmatmul.f32.gmra.mxu0 %v134
    %v363 = vpop.f32.mrf.mxu0
    %v364 = vadd.f32 0.0, %v363
    %365 = vmatmul.f32.gmra.mxu0 %v137
    %v366 = vpop.f32.mrf.mxu0
    %v367 = vadd.f32 0.0, %v366
    %368 = vmatmul.f32.gmra.mxu0 %v140
    %v369 = vpop.f32.mrf.mxu0
    %v370 = vadd.f32 0.0, %v369
    %371 = vmatmul.f32.gmra.mxu0 %v143
    %v372 = vpop.f32.mrf.mxu0
    %v373 = vadd.f32 0.0, %v372
    %374 = vdwg.mxu0
    %v375 = vmax.f32 %v163, %v280
    %v376 = vmax.f32 %v166, %v283
    %v377 = vmax.f32 %v169, %v286
    %v378 = vmax.f32 %v172, %v289
    %v379 = vmax.f32 %v175, %v292
    %v380 = vmax.f32 %v178, %v295
    %v381 = vmax.f32 %v181, %v298
    %v382 = vmax.f32 %v184, %v301
    %v383 = vmax.f32 %v187, %v304
    %v384 = vmax.f32 %v190, %v307
    %v385 = vmax.f32 %v193, %v310
    %v386 = vmax.f32 %v196, %v313
    %v387 = vmax.f32 %v199, %v316
    %v388 = vmax.f32 %v202, %v319
    %v389 = vmax.f32 %v205, %v322
    %v390 = vmax.f32 %v208, %v325
    %v391 = vmax.f32 %v211, %v328
    %v392 = vmax.f32 %v214, %v331
    %v393 = vmax.f32 %v217, %v334
    %v394 = vmax.f32 %v220, %v337
    %v395 = vmax.f32 %v223, %v340
    %v396 = vmax.f32 %v226, %v343
    %v397 = vmax.f32 %v229, %v346
    %v398 = vmax.f32 %v232, %v349
    %v399 = vmax.f32 %v235, %v352
    %v400 = vmax.f32 %v238, %v355
    %v401 = vmax.f32 %v241, %v358
    %v402 = vmax.f32 %v244, %v361
    %v403 = vmax.f32 %v247, %v364
    %v404 = vmax.f32 %v250, %v367
    %v405 = vmax.f32 %v253, %v370
    %v406 = vmax.f32 %v256, %v373
    %v407 = vld [vmem:[%s1 + $0x10] sm:$0xff]
    %v408 = vld [vmem:[%s1 + $0x28] sm:$0xff]
    %v409 = vld [vmem:[%s1 + $0x40] sm:$0xff]
    %v410 = vld [vmem:[%s1 + $0x58] sm:$0xff]
    %411 = vmatpush.msra.mxu0 0.0
    %412 = vmatpush.msra.mxu0 0.0
    %413 = vmatpush.msra.mxu0 0.0
    %414 = vmatpush.msra.mxu0 0.0
    %415 = vmatpush.msra.mxu0 0.0
    %416 = vmatpush.msra.mxu0 0.0
    %417 = vmatpush.msra.mxu0 0.0
    %418 = vmatpush.msra.mxu0 0.0
    %419 = vmatpush.msra.mxu0 0.0
    %420 = vmatpush.msra.mxu0 0.0
    %421 = vmatpush.msra.mxu0 0.0
    %422 = vmatpush.msra.mxu0 0.0
    %423 = vmatpush.msra.mxu0 %v410
    %424 = vmatpush.msra.mxu0 %v409
    %425 = vmatpush.msra.mxu0 %v408
    %426 = vmatpush.msra.mxu0 %v407
    %427 = vmatmul.f32.gmra.mxu0 %v50
    %v428 = vpop.f32.mrf.mxu0
    %v429 = vadd.f32 0.0, %v428
    %430 = vmatmul.f32.gmra.mxu0 %v53
    %v431 = vpop.f32.mrf.mxu0
    %v432 = vadd.f32 0.0, %v431
    %433 = vmatmul.f32.gmra.mxu0 %v56
    %v434 = vpop.f32.mrf.mxu0
    %v435 = vadd.f32 0.0, %v434
    %436 = vmatmul.f32.gmra.mxu0 %v59
    %v437 = vpop.f32.mrf.mxu0
    %v438 = vadd.f32 0.0, %v437
    %439 = vmatmul.f32.gmra.mxu0 %v62
    %v440 = vpop.f32.mrf.mxu0
    %v441 = vadd.f32 0.0, %v440
    %442 = vmatmul.f32.gmra.mxu0 %v65
    %v443 = vpop.f32.mrf.mxu0
    %v444 = vadd.f32 0.0, %v443
    %445 = vmatmul.f32.gmra.mxu0 %v68
    %v446 = vpop.f32.mrf.mxu0
    %v447 = vadd.f32 0.0, %v446
    %448 = vmatmul.f32.gmra.mxu0 %v71
    %v449 = vpop.f32.mrf.mxu0
    %v450 = vadd.f32 0.0, %v449
    %451 = vmatmul.f32.gmra.mxu0 %v74
    %v452 = vpop.f32.mrf.mxu0
    %v453 = vadd.f32 0.0, %v452
    %454 = vmatmul.f32.gmra.mxu0 %v77
    %v455 = vpop.f32.mrf.mxu0
    %v456 = vadd.f32 0.0, %v455
    %457 = vmatmul.f32.gmra.mxu0 %v80
    %v458 = vpop.f32.mrf.mxu0
    %v459 = vadd.f32 0.0, %v458
    %460 = vmatmul.f32.gmra.mxu0 %v83
    %v461 = vpop.f32.mrf.mxu0
    %v462 = vadd.f32 0.0, %v461
    %463 = vmatmul.f32.gmra.mxu0 %v86
    %v464 = vpop.f32.mrf.mxu0
    %v465 = vadd.f32 0.0, %v464
    %466 = vmatmul.f32.gmra.mxu0 %v89
    %v467 = vpop.f32.mrf.mxu0
    %v468 = vadd.f32 0.0, %v467
    %469 = vmatmul.f32.gmra.mxu0 %v92
    %v470 = vpop.f32.mrf.mxu0
    %v471 = vadd.f32 0.0, %v470
    %472 = vmatmul.f32.gmra.mxu0 %v95
    %v473 = vpop.f32.mrf.mxu0
    %v474 = vadd.f32 0.0, %v473
    %475 = vmatmul.f32.gmra.mxu0 %v98
    %v476 = vpop.f32.mrf.mxu0
    %v477 = vadd.f32 0.0, %v476
    %478 = vmatmul.f32.gmra.mxu0 %v101
    %v479 = vpop.f32.mrf.mxu0
    %v480 = vadd.f32 0.0, %v479
    %481 = vmatmul.f32.gmra.mxu0 %v104
    %v482 = vpop.f32.mrf.mxu0
    %v483 = vadd.f32 0.0, %v482
    %484 = vmatmul.f32.gmra.mxu0 %v107
    %v485 = vpop.f32.mrf.mxu0
    %v486 = vadd.f32 0.0, %v485
    %487 = vmatmul.f32.gmra.mxu0 %v110
    %v488 = vpop.f32.mrf.mxu0
    %v489 = vadd.f32 0.0, %v488
    %490 = vmatmul.f32.gmra.mxu0 %v113
    %v491 = vpop.f32.mrf.mxu0
    %v492 = vadd.f32 0.0, %v491
    %493 = vmatmul.f32.gmra.mxu0 %v116
    %v494 = vpop.f32.mrf.mxu0
    %v495 = vadd.f32 0.0, %v494
    %496 = vmatmul.f32.gmra.mxu0 %v119
    %v497 = vpop.f32.mrf.mxu0
    %v498 = vadd.f32 0.0, %v497
    %499 = vmatmul.f32.gmra.mxu0 %v122
    %v500 = vpop.f32.mrf.mxu0
    %v501 = vadd.f32 0.0, %v500
    %502 = vmatmul.f32.gmra.mxu0 %v125
    %v503 = vpop.f32.mrf.mxu0
    %v504 = vadd.f32 0.0, %v503
    %505 = vmatmul.f32.gmra.mxu0 %v128
    %v506 = vpop.f32.mrf.mxu0
    %v507 = vadd.f32 0.0, %v506
    %508 = vmatmul.f32.gmra.mxu0 %v131
    %v509 = vpop.f32.mrf.mxu0
    %v510 = vadd.f32 0.0, %v509
    %511 = vmatmul.f32.gmra.mxu0 %v134
    %v512 = vpop.f32.mrf.mxu0
    %v513 = vadd.f32 0.0, %v512
    %514 = vmatmul.f32.gmra.mxu0 %v137
    %v515 = vpop.f32.mrf.mxu0
    %v516 = vadd.f32 0.0, %v515
    %517 = vmatmul.f32.gmra.mxu0 %v140
    %v518 = vpop.f32.mrf.mxu0
    %v519 = vadd.f32 0.0, %v518
    %520 = vmatmul.f32.gmra.mxu0 %v143
    %v521 = vpop.f32.mrf.mxu0
    %v522 = vadd.f32 0.0, %v521
    %523 = vdwg.mxu0
    %v524 = vmax.f32 %v375, %v429
    %v525 = vmax.f32 %v376, %v432
    %v526 = vmax.f32 %v377, %v435
    %v527 = vmax.f32 %v378, %v438
    %v528 = vmax.f32 %v379, %v441
    %v529 = vmax.f32 %v380, %v444
    %v530 = vmax.f32 %v381, %v447
    %v531 = vmax.f32 %v382, %v450
    %v532 = vmax.f32 %v383, %v453
    %v533 = vmax.f32 %v384, %v456
    %v534 = vmax.f32 %v385, %v459
    %v535 = vmax.f32 %v386, %v462
    %v536 = vmax.f32 %v387, %v465
    %v537 = vmax.f32 %v388, %v468
    %v538 = vmax.f32 %v389, %v471
    %v539 = vmax.f32 %v390, %v474
    %v540 = vmax.f32 %v391, %v477
    %v541 = vmax.f32 %v392, %v480
    %v542 = vmax.f32 %v393, %v483
    %v543 = vmax.f32 %v394, %v486
    %v544 = vmax.f32 %v395, %v489
    %v545 = vmax.f32 %v396, %v492
    %v546 = vmax.f32 %v397, %v495
    %v547 = vmax.f32 %v398, %v498
    %v548 = vmax.f32 %v399, %v501
    %v549 = vmax.f32 %v400, %v504
    %v550 = vmax.f32 %v401, %v507
    %v551 = vmax.f32 %v402, %v510
    %v552 = vmax.f32 %v403, %v513
    %v553 = vmax.f32 %v404, %v516
    %v554 = vmax.f32 %v405, %v519
    %v555 = vmax.f32 %v406, %v522
    %556 = vst [vmem:[#allocation2] sm:$0xff] %v524
    %557 = vst [vmem:[#allocation2 + $0x8] sm:$0xff] %v525
    %558 = vst [vmem:[#allocation2 + $0x10] sm:$0xff] %v526
    %559 = vst [vmem:[#allocation2 + $0x18] sm:$0xff] %v527
    %560 = vst [vmem:[#allocation2 + $0x20] sm:$0xff] %v528
    %561 = vst [vmem:[#allocation2 + $0x28] sm:$0xff] %v529
    %562 = vst [vmem:[#allocation2 + $0x30] sm:$0xff] %v530
    %563 = vst [vmem:[#allocation2 + $0x38] sm:$0xff] %v531
    %564 = vst [vmem:[#allocation2 + $0x40] sm:$0xff] %v532
    %565 = vst [vmem:[#allocation2 + $0x48] sm:$0xff] %v533
    %566 = vst [vmem:[#allocation2 + $0x50] sm:$0xff] %v534
    %567 = vst [vmem:[#allocation2 + $0x58] sm:$0xff] %v535
    %568 = vst [vmem:[#allocation2 + $0x60] sm:$0xff] %v536
    %569 = vst [vmem:[#allocation2 + $0x68] sm:$0xff] %v537
    %570 = vst [vmem:[#allocation2 + $0x70] sm:$0xff] %v538
    %571 = vst [vmem:[#allocation2 + $0x78] sm:$0xff] %v539
    %572 = vst [vmem:[#allocation2 + $0x80] sm:$0xff] %v540
    %573 = vst [vmem:[#allocation2 + $0x88] sm:$0xff] %v541
    %574 = vst [vmem:[#allocation2 + $0x90] sm:$0xff] %v542
    %575 = vst [vmem:[#allocation2 + $0x98] sm:$0xff] %v543
    %576 = vst [vmem:[#allocation2 + $0xa0] sm:$0xff] %v544
    %577 = vst [vmem:[#allocation2 + $0xa8] sm:$0xff] %v545
    %578 = vst [vmem:[#allocation2 + $0xb0] sm:$0xff] %v546
    %579 = vst [vmem:[#allocation2 + $0xb8] sm:$0xff] %v547
    %580 = vst [vmem:[#allocation2 + $0xc0] sm:$0xff] %v548
    %581 = vst [vmem:[#allocation2 + $0xc8] sm:$0xff] %v549
    %582 = vst [vmem:[#allocation2 + $0xd0] sm:$0xff] %v550
    %583 = vst [vmem:[#allocation2 + $0xd8] sm:$0xff] %v551
    %584 = vst [vmem:[#allocation2 + $0xe0] sm:$0xff] %v552
    %585 = vst [vmem:[#allocation2 + $0xe8] sm:$0xff] %v553
    %586 = vst [vmem:[#allocation2 + $0xf0] sm:$0xff] %v554
    %587 = vst [vmem:[#allocation2 + $0xf8] sm:$0xff] %v555
    // Predicated region
    $region10: #{tpu_custom_call.1} parent=1 // pred_check
      _
    $region11: #{tpu_custom_call.1} parent=1 // pred_check_branch
      %589 = sbr.rel (0) target = $region13
    $region12: #{tpu_custom_call.1} parent=1 // pred_region
      %591 = vsyncadd [#allocation3], 0
      %s592 = sshll.u32 [#allocation2], 4
      %s593 = int_to_ptr.vmem [resolvable:$true] %s592
      %s594 = sshll.u32 %s2, 4
      %s595 = int_to_ptr.hbm [resolvable:$true] %s594
      %600 = dma.vmem_to_hbm [thread:$0]  %s593, 4096, %s595, [#allocation3], 128, 128, 8
    $region13: #{tpu_custom_call.1} parent=1 // pred_fallthru
      _
    // Predicated region
    $region14: #{tpu_custom_call.1} parent=1 // pred_check
      _
    $region15: #{tpu_custom_call.1} parent=1 // pred_check_branch
      %602 = sbr.rel (0) target = $region17
    $region16: #{tpu_custom_call.1} parent=1 // pred_region
      %604 = dma.done [#allocation3], 4096
    $region17: #{tpu_custom_call.1} parent=1 // pred_fallthru
      _
    %605 = vsyncpa [#allocation3], 1

</llo_original>
